<compile_context>
chip_gen: v6e
topology: v6e:2x2x1
jax: 0.10.0
libtpu: 0.0.40
codegen_flags: <defaults>
</compile_context>

<pallas_src>
import functools

import jax
import jax.numpy as jnp
from jax.experimental import pallas as pl
from jax.experimental.pallas import tpu as pltpu

_SMALL_INPUT_BYTES = 256 * 1024  # below this, fused XLA beats a pallas_call


def _lambda_kernel(x_ref, o_ref, *, lambd, compute_dtype):
    # Hot path: apply the elementwise lambda to the whole VMEM tile.
    x = x_ref[...]
    if compute_dtype is not None:
        # e.g. f32 compute for bf16 transcendental-heavy lambdas on v5e
        # (no bf16 VPU/EUP path there); still mem-bound either way.
        x = x.astype(compute_dtype)
    o_ref[...] = lambd(x).astype(o_ref.dtype)


def _chip_config():
    """Generation-dependent block / VMEM sizing.

    128 MiB-VMEM chips (v5e/v6e, 1 TensorCore/chip): big blocks amortize the
    ~0.35 us/step pipeline overhead; a 64 MiB cap still leaves half of VMEM.
    64 MiB-VMEM chips (v7x-class, 2 TensorCores/chip): smaller blocks, keep
    double-buffered in+out well under the scoped limit, and split work so
    both TensorCores stream HBM (per-TC bandwidth).
    """
    vmem_bytes = 128 * 1024 * 1024
    try:
        info = pltpu.get_tpu_info()
        vmem_bytes = int(getattr(info, "vmem_capacity_bytes", vmem_bytes))
    except Exception:
        pass
    if vmem_bytes >= 100 * 1024 * 1024:
        return {"target_block_bytes": 8 * 1024 * 1024,   # in+out combined
                "vmem_cap": 64 * 1024 * 1024,
                "num_tensorcores": 1}
    return {"target_block_bytes": 2 * 1024 * 1024,       # in+out combined
            "vmem_cap": 28 * 1024 * 1024,
            "num_tensorcores": 2}


def _cost_estimate(lambd, x_aval, n, in_itemsize, out_itemsize):
    """Advisory cost hint derived from the actual lambda when possible."""
    bytes_accessed = n * (in_itemsize + out_itemsize)
    try:
        est = pl.estimate_cost(lambd, x_aval)
        return pl.CostEstimate(flops=max(int(est.flops), n),
                               transcendentals=int(est.transcendentals),
                               bytes_accessed=bytes_accessed)
    except Exception:
        return pl.CostEstimate(flops=2 * n, transcendentals=0,
                               bytes_accessed=bytes_accessed)


def lambda_layer(lambd, x, *, compute_dtype=None, donate_input=False,
                 force_pallas=False):
    """Pallas implementation of LambdaLayer.forward for elementwise lambdas.

    Args:
      lambd: jnp-traceable, shape-preserving, ELEMENTWISE function (see module
        comment for the contract).
      x: input array, any shape (NCHW for conv-style inputs).
      compute_dtype: optional dtype to cast the tile to before applying lambd
        (e.g. jnp.float32 on v5e for transcendental-heavy bf16 lambdas).
      donate_input: opt-in; alias the input HBM buffer as the output when the
        lambda preserves dtype (saves a full-size output allocation).
      force_pallas: disable the small-input bypass (used by tests).
    Returns:
      lambd(x), same shape as x (dtype follows lambd's output dtype).
    """
    orig_shape = x.shape
    n = x.size
    in_itemsize = jnp.dtype(x.dtype).itemsize

    # Shape guard: only shape-preserving lambdas are supported by this
    # generic flattened-elementwise kernel (elementwise-ness itself is a
    # documented contract and cannot be verified from shapes alone).
    out_aval = jax.eval_shape(lambd, jax.ShapeDtypeStruct(x.shape, x.dtype))
    if out_aval.shape != x.shape:
        raise ValueError(
            "lambda_layer Pallas kernel only supports shape-preserving "
            f"elementwise lambdas; got {x.shape} -> {out_aval.shape}")
    out_dtype = out_aval.dtype
    out_itemsize = jnp.dtype(out_dtype).itemsize

    # Small-input bypass: launch + pipeline overhead dominates; XLA's fused
    # elementwise path is strictly faster and avoids an un-fused HBM trip.
    if n == 0 or (not force_pallas and n * in_itemsize < _SMALL_INPUT_BYTES):
        return lambd(x)

    # Ragged sizes: the fused XLA path is already one read + one write; the
    # old pad + trailing-slice fallback cost two extra full HBM copies.
    # TODO(synk): keep ragged sizes in Pallas via SMEM length + masked store.
    if n % 128 != 0:
        return lambd(x)

    cfg = _chip_config()

    # Dtype-aware sublane packing: 8 rows (f32), 16 (bf16/f16), 32 (int8/fp8).
    pack = 8 * max(1, 4 // in_itemsize)

    # Widest lane dim (multiple of 128) that divides numel, so the flatten is
    # a free reshape and stores are long unmasked lane-dense runs.
    lane = 128
    for cand in (8192, 4096, 2048, 1024, 512, 256, 128):
        if n % cand == 0:
            lane = cand
            break
    rows = n // lane
    x2d = x.reshape(rows, lane)

    # Block rows: as big as the combined (in+out) target block size allows
    # (multiple of the packed sublane tile).
    comb = in_itemsize + out_itemsize
    max_rows = max(pack, (cfg["target_block_bytes"] // (lane * comb)) // pack * pack)
    if rows <= max_rows:
        block_rows = rows            # single full-extent block (always legal)
        if cfg["num_tensorcores"] > 1 and rows >= 2 * pack:
            # 2-TC chip: split the single resident block so both TensorCores
            # stream HBM; round DOWN to a multiple of `pack` so blocks stay
            # balanced (never one big block + a small remainder).
            block_rows = max(pack, (rows // 2) // pack * pack)
    else:
        block_rows = max_rows        # partial edge block handled by Pallas
    grid = (pl.cdiv(rows, block_rows),)

    # Explicit VMEM cap: double-buffered in + out blocks + headroom, clamped
    # to the generation-appropriate ceiling.
    block_bytes = block_rows * lane * comb
    vmem_limit = int(min(cfg["vmem_cap"],
                         max(16 * 1024 * 1024, 3 * block_bytes)))

    cost = _cost_estimate(lambd, jax.ShapeDtypeStruct(x.shape, x.dtype),
                          n, in_itemsize, out_itemsize)

    io_aliases = {}
    if donate_input and out_dtype == x.dtype:
        io_aliases = {0: 0}

    out2d = pl.pallas_call(
        functools.partial(_lambda_kernel, lambd=lambd,
                          compute_dtype=compute_dtype),
        out_shape=jax.ShapeDtypeStruct((rows, lane), out_dtype),
        grid_spec=pltpu.PrefetchScalarGridSpec(
            num_scalar_prefetch=0,
            grid=grid,
            in_specs=[pl.BlockSpec((block_rows, lane), lambda i: (i, 0))],
            out_specs=pl.BlockSpec((block_rows, lane), lambda i: (i, 0)),
        ),
        compiler_params=pltpu.CompilerParams(
            dimension_semantics=("parallel",),
            vmem_limit_bytes=vmem_limit,
        ),
        cost_estimate=cost,
        input_output_aliases=io_aliases,
    )(x2d)

    return out2d.reshape(orig_shape)


if __name__ == "__main__":
    key = jax.random.PRNGKey(0)

    # Example lambda (as would be passed to LambdaLayer(lambd)):
    # a shape-preserving elementwise transform.
    lambd = lambda t: jnp.maximum(t, 0.0) * 2.0 + 1.0

    # 1) Small NCHW conv-style input: batch=2, channels=4, spatial=16x16 (f32)
    #    — default path (small-input bypass).
    x = jax.random.normal(key, (2, 4, 16, 16), dtype=jnp.float32)
    out = jax.block_until_ready(lambda_layer(lambd, x))
    ref = lambd(x)
    assert out.shape == ref.shape and out.dtype == ref.dtype
    assert jnp.allclose(out, ref, atol=1e-6, rtol=1e-6)

    # 2) Same small input forced through the Pallas kernel path.
    out_f = jax.block_until_ready(lambda_layer(lambd, x, force_pallas=True))
    assert jnp.allclose(out_f, ref, atol=1e-6, rtol=1e-6)

    # 3) Larger f32 input (512 KiB): multi-block / TC-shardable Pallas path.
    x2 = jax.random.normal(jax.random.PRNGKey(1), (4, 8, 32, 128),
                           dtype=jnp.float32)
    out2 = jax.block_until_ready(lambda_layer(lambd, x2))
    ref2 = lambd(x2)
    assert jnp.allclose(out2, ref2, atol=1e-6, rtol=1e-6)

    # 4) bf16 packed-tile Pallas path with a transcendental-heavy lambda
    #    (exercises the jaxpr-derived cost estimate too).
    soft = lambda t: jax.nn.sigmoid(t) * t
    x3 = jax.random.normal(jax.random.PRNGKey(2), (4, 8, 32, 32),
                           dtype=jnp.bfloat16)
    out3 = jax.block_until_ready(lambda_layer(soft, x3, force_pallas=True))
    ref3 = soft(x3)
    assert out3.shape == ref3.shape and out3.dtype == ref3.dtype
    assert jnp.allclose(out3.astype(jnp.float32), ref3.astype(jnp.float32),
                        atol=2e-2, rtol=2e-2)

    # 5) Ragged numel (not a multiple of 128): correct via fused XLA fallback.
    x4 = jax.random.normal(jax.random.PRNGKey(3), (3, 5, 7), dtype=jnp.float32)
    out4 = jax.block_until_ready(lambda_layer(lambd, x4))
    assert jnp.allclose(out4, lambd(x4), atol=1e-6, rtol=1e-6)

    print("KERNEL_OK")
</pallas_src>

<mosaic_0001>
module attributes {stable_mosaic.version = 11 : i64} {
  func.func @_lambda_kernel(%arg0: i32, %arg1: memref<1x2048xf32, #tpu.memory_space<vmem>>, %arg2: memref<1x2048xf32, #tpu.memory_space<vmem>>) attributes {dimension_semantics = [#tpu.dimension_semantics<parallel>], iteration_bounds = array<i64: 1>, scalar_prefetch = 0 : i64, scratch_operands = 0 : i64, tpu.core_type = #tpu.core_type<tc>, window_params = [{transform_indices = @transform_0, window_bounds = array<i64: 1, 2048>}, {transform_indices = @transform_1, window_bounds = array<i64: 1, 2048>}]} {
    %c0 = arith.constant 0 : index
    %c0_0 = arith.constant 0 : index
    %0 = vector.load %arg1[%c0, %c0_0] : memref<1x2048xf32, #tpu.memory_space<vmem>>, vector<1x2048xf32>
    %cst = arith.constant 0.000000e+00 : f32
    %1 = vector.broadcast %cst : f32 to vector<1x2048xf32>
    %2 = arith.maximumf %0, %1 : vector<1x2048xf32>
    %cst_1 = arith.constant 2.000000e+00 : f32
    %3 = vector.broadcast %cst_1 : f32 to vector<1x2048xf32>
    %4 = arith.mulf %2, %3 : vector<1x2048xf32>
    %cst_2 = arith.constant 1.000000e+00 : f32
    %5 = vector.broadcast %cst_2 : f32 to vector<1x2048xf32>
    %6 = arith.addf %4, %5 : vector<1x2048xf32>
    %c0_3 = arith.constant 0 : index
    %c0_4 = arith.constant 0 : index
    %7 = vector.load %arg2[%c0_3, %c0_4] : memref<1x2048xf32, #tpu.memory_space<vmem>>, vector<1x2048xf32>
    tpu.vector_store %arg2[%c0_3, %c0_4], %6 {strides = array<i32>} : memref<1x2048xf32, #tpu.memory_space<vmem>>, vector<1x2048xf32>,
    return
  }
  func.func @transform_0(%arg0: i32) -> (i32, i32) {
    %c0_i32 = arith.constant 0 : i32
    %c0_i32_0 = arith.constant 0 : i32
    return %arg0, %c0_i32 : i32, i32
  }
  func.func @transform_1(%arg0: i32) -> (i32, i32) {
    %c0_i32 = arith.constant 0 : i32
    %c0_i32_0 = arith.constant 0 : i32
    return %arg0, %c0_i32 : i32, i32
  }
}

</mosaic_0001>

<llo_original>
// kernel: tpu_custom_call.1
$region0: #{tpu_custom_call.1}
  #allocation0 [shape = 'u32[]', space=smem, size = 0x4, offset = 0x4, fixed_abs, tag = 'smem constant byte address 0x4 - core index']
  #allocation1 [shape = 'u32[144,128]{1,0:T(1,128)}', space=vmem, size = 0x12000, scoped, tag = 'internal scratch']
  %s0 = inlined_call_operand.hbm [shape: f32[1,2048], index: 0, kind: input, shape index: {}]
  %s1 = inlined_call_operand.hbm [shape: f32[1,2048], index: 1, kind: output, shape index: {}]
  %s2 = sld [smem:[#allocation0]]
  $region18: #{tpu_custom_call.1} parent=0
    _
  %s4 = ssub.s32 1, %s2
  %s5 = scalar_select 0, %s4, %s2
  $region1: #{tpu_custom_call.1} parent=0
    #allocation2 [shape = 'u8[8192]{0}', space=vmem, size = 0x2000, scoped, tag = 'input window, operand 0, single buffered']
    #allocation3 [shape = 's32[1]{0}', space=sflag, size = 0x4, scoped, tag = 'scoped memory for tpu_custom_call.1']
    #allocation4 [shape = 's32[1]{0}', space=sflag, size = 0x4, scoped, tag = 'scoped memory for tpu_custom_call.1']
    #allocation5 [shape = 'u8[8192]{0}', space=vmem, size = 0x2000, scoped, tag = 'output window, operand 0, single buffered']
    %6 = vsyncpa [#allocation3], 0
    %7 = vsyncpa [#allocation4], 0
    // Predicated region
    $region2: #{tpu_custom_call.1} parent=1 // pred_check
      _
    $region3: #{tpu_custom_call.1} parent=1 // pred_check_branch
      %9 = sbr.rel (0) target = $region5
    $region4: #{tpu_custom_call.1} parent=1 // pred_region
      %s11 = ssub.s32 256, 256
      %12 = vsyncadd [#allocation3], %s11
      %s14 = sshll.u32 [#allocation2], 4
      %s15 = int_to_ptr.vmem [resolvable:$true] %s14
      %17 = dma.hbm_to_vmem [thread:$0]  %s0, 256, %s15, [#allocation3]
    $region5: #{tpu_custom_call.1} parent=1 // pred_fallthru
      _
    // Predicated region
    $region6: #{tpu_custom_call.1} parent=1 // pred_check
      _
    $region7: #{tpu_custom_call.1} parent=1 // pred_check_branch
      %19 = sbr.rel (0) target = $region9
    $region8: #{tpu_custom_call.1} parent=1 // pred_region
      %20 = dma.done [#allocation3], 256
    $region9: #{tpu_custom_call.1} parent=1 // pred_fallthru
      _
    %v21 = vld [vmem:[#allocation2] sm:$0xff]
    %v22 = vld [vmem:[#allocation2 + $0x8] sm:$0xff]
    %v23 = vmax.f32 %v21, 0.0
    %v24 = vmax.f32 %v22, 0.0
    %v25 = vmul.f32 %v23, 2.0
    %v26 = vmul.f32 %v24, 2.0
    %v27 = vadd.f32 %v25, 1.0
    %v28 = vadd.f32 %v26, 1.0
    %29 = vst [vmem:[#allocation5] sm:$0xff] %v27
    %30 = vst [vmem:[#allocation5 + $0x8] sm:$0xff] %v28
    // Predicated region
    $region10: #{tpu_custom_call.1} parent=1 // pred_check
      _
    $region11: #{tpu_custom_call.1} parent=1 // pred_check_branch
      %32 = sbr.rel (0) target = $region13
    $region12: #{tpu_custom_call.1} parent=1 // pred_region
      %s34 = ssub.s32 256, 256
      %35 = vsyncadd [#allocation4], %s34
      %s37 = sshll.u32 [#allocation5], 4
      %s38 = int_to_ptr.vmem [resolvable:$true] %s37
      %40 = dma.vmem_to_hbm [thread:$0]  %s38, 256, %s1, [#allocation4]
    $region13: #{tpu_custom_call.1} parent=1 // pred_fallthru
      _
    // Predicated region
    $region14: #{tpu_custom_call.1} parent=1 // pred_check
      _
    $region15: #{tpu_custom_call.1} parent=1 // pred_check_branch
      %42 = sbr.rel (0) target = $region17
    $region16: #{tpu_custom_call.1} parent=1 // pred_region
      %43 = dma.done [#allocation4], 256
    $region17: #{tpu_custom_call.1} parent=1 // pred_fallthru
      _
    %44 = vsyncpa [#allocation3], 1
    %45 = vsyncpa [#allocation4], 1

</llo_original>
